<compile_context>
chip_gen: v6e
topology: v6e:2x2x1
jax: 0.10.0
libtpu: 0.0.40
codegen_flags: <defaults>
</compile_context>

<pallas_src>
import functools
import math

import jax
import jax.numpy as jnp
from jax.experimental import pallas as pl
from jax.experimental.pallas import tpu as pltpu


# ----------------------------------------------------------------------------
# Kernel
# ----------------------------------------------------------------------------
def _pad_kernel(x_ref, o_ref, *, in_len: int, pad_value: float, lane_aligned: bool):
    tb, out_len = o_ref.shape
    if lane_aligned:
        # in_len % 128 == 0: copy once, splat only the pad tail (no double store
        # of the leading lanes; matters most on v5e's single vector-store slot).
        o_ref[:, :in_len] = x_ref[...]
        o_ref[:, in_len:] = jnp.full((tb, out_len - in_len), pad_value, dtype=o_ref.dtype)
    else:
        # Unaligned in_len: unmasked lane-dense fill of the whole tile, then
        # overwrite the leading in_len lanes (masked only on the partial vreg).
        o_ref[...] = jnp.full((tb, out_len), pad_value, dtype=o_ref.dtype)
        o_ref[:, :in_len] = x_ref[...]


# ----------------------------------------------------------------------------
# Tiling helpers
# ----------------------------------------------------------------------------
_MIN_GRID_STEPS = 8          # keep >= 8 grid steps so pipelining never dies
_MAX_ROW_TILE = 1024         # roofline fraction plateaus around 512-1024 rows


def _sublane_multiple(dtype) -> int:
    itemsize = jnp.dtype(dtype).itemsize
    if itemsize >= 4:
        return 8
    if itemsize == 2:
        return 16
    return 32


def _round_up(x: int, m: int) -> int:
    return ((x + m - 1) // m) * m


def _vmem_params():
    """(tile_budget_bytes, vmem_limit_bytes) derived from the chip generation."""
    phys = 64 * 1024 * 1024  # conservative fallback (v7x has the smallest VMEM)
    try:
        info = pltpu.get_tpu_info()
        phys = int(getattr(info, "vmem_capacity_bytes", phys))
    except Exception:
        pass
    vmem_limit = min(phys // 2, 32 * 1024 * 1024)        # raise scoped default safely
    tile_budget = max(8 * 1024 * 1024, vmem_limit - 8 * 1024 * 1024)  # headroom
    return tile_budget, vmem_limit


def _choose_row_tile(batch: int, in_len: int, max_length: int, dtype,
                     tile_budget: int) -> int:
    """Row tile (sublane multiple).  Returns 0 to request the jnp.pad fallback."""
    itemsize = jnp.dtype(dtype).itemsize
    sub = _sublane_multiple(dtype)
    per_row_bytes = (in_len + max_length) * itemsize

    # Largest tile whose double-buffered in+out copies fit in the budget.
    tb_vmem = (tile_budget // (2 * per_row_bytes)) // sub * sub
    if tb_vmem < sub:
        return 0  # huge-row corner case: even one sublane-multiple row overflows

    # Cap so the grid keeps >= _MIN_GRID_STEPS steps (pipelining / multi-core).
    tb_steps = _round_up(pl.cdiv(batch, _MIN_GRID_STEPS), sub)

    tb = min(tb_vmem, tb_steps, _MAX_ROW_TILE)
    return max(tb, sub)


# ----------------------------------------------------------------------------
# Pallas path (2-D input: (batch, in_len) -> (batch, max_length))
# ----------------------------------------------------------------------------
def _pad_pallas_2d(x2d: jax.Array, max_length: int, pad_value: float):
    batch, in_len = x2d.shape
    itemsize = jnp.dtype(x2d.dtype).itemsize

    tile_budget, vmem_limit = _vmem_params()
    tb = _choose_row_tile(batch, in_len, max_length, x2d.dtype, tile_budget)
    if tb == 0:
        return None  # caller falls back to jnp.pad

    kernel = functools.partial(
        _pad_kernel,
        in_len=in_len,
        pad_value=pad_value,
        lane_aligned=(in_len % 128 == 0),
    )

    # TODO(synk): on v7x, use pltpu.CORE_PARALLEL for the batch axis so each
    # TensorCore drives its own DMA stream; "parallel" is kept here as it is
    # safe on every generation.
    return pl.pallas_call(
        kernel,
        out_shape=jax.ShapeDtypeStruct((batch, max_length), x2d.dtype),
        grid=(pl.cdiv(batch, tb),),
        in_specs=[pl.BlockSpec((tb, in_len), lambda i: (i, 0))],
        out_specs=pl.BlockSpec((tb, max_length), lambda i: (i, 0)),
        compiler_params=pltpu.CompilerParams(
            dimension_semantics=("parallel",),
            vmem_limit_bytes=vmem_limit,
        ),
        cost_estimate=pl.CostEstimate(
            flops=0,
            transcendentals=0,
            bytes_accessed=batch * (in_len + max_length) * itemsize,
        ),
    )(x2d)


# ----------------------------------------------------------------------------
# Public wrapper (matches PadTransform.forward semantics)
# ----------------------------------------------------------------------------
_MIN_PALLAS_OUT_BYTES = 2 * 1024 * 1024   # below this, XLA's pad fusion wins
_MIN_PALLAS_LANES = 128                   # lane-dense output only


def _jnp_pad(x: jax.Array, max_length: int, in_len: int, pad_val: float) -> jax.Array:
    pad_width = [(0, 0)] * (x.ndim - 1) + [(0, max_length - in_len)]
    return jnp.pad(x, pad_width, constant_values=pad_val)


def pad_transform(x: jax.Array, max_length: int, pad_value) -> jax.Array:
    """JAX/Pallas equivalent of PadTransform.forward.

    x: (..., L). If L < max_length, returns (..., max_length) padded with
    float(pad_value); otherwise returns x unchanged (no truncation).
    """
    in_len = x.shape[-1]
    if in_len >= max_length:
        return x

    pad_val = float(pad_value)  # matches the PyTorch module's float(pad_value)
    lead_shape = x.shape[:-1]
    batch = math.prod(lead_shape) if lead_shape else 1

    out_bytes = batch * max_length * jnp.dtype(x.dtype).itemsize
    if max_length < _MIN_PALLAS_LANES or out_bytes < _MIN_PALLAS_OUT_BYTES:
        # Tiny / narrow case: plain jnp.pad beats any kernel launch.
        return _jnp_pad(x, max_length, in_len, pad_val)

    x2d = x.reshape(batch, in_len)
    out2d = _pad_pallas_2d(x2d, max_length, pad_val)
    if out2d is None:
        # Huge-row corner case: tiles would overflow VMEM -> graceful fallback.
        return _jnp_pad(x, max_length, in_len, pad_val)
    return out2d.reshape(*lead_shape, max_length)


# ----------------------------------------------------------------------------
# Demo / self-test
# ----------------------------------------------------------------------------
if __name__ == "__main__":
    key = jax.random.PRNGKey(0)

    # 1) Small shape consistent with the module (uses the jnp.pad fast path).
    batch, seq, max_length, pad_value = 2, 8, 16, 0
    x_small = jax.random.normal(key, (batch, seq), dtype=jnp.float32)
    out_small = jax.block_until_ready(pad_transform(x_small, max_length, pad_value))
    ref_small = jnp.pad(
        x_small, ((0, 0), (0, max_length - seq)), constant_values=float(pad_value)
    )
    assert out_small.shape == (batch, max_length), out_small.shape
    assert out_small.dtype == x_small.dtype
    assert bool(jnp.allclose(out_small, ref_small)), "small-shape mismatch"

    # 2) Identity path: input already >= max_length.
    x_long = jax.random.normal(key, (batch, max_length + 4), dtype=jnp.float32)
    out_long = jax.block_until_ready(pad_transform(x_long, max_length, pad_value))
    assert out_long.shape == x_long.shape
    assert bool(jnp.allclose(out_long, x_long))

    # 3) Lane-aligned in_len (384 % 128 == 0): exercises the tail-only-fill path.
    B, L, ML, PV = 2048, 384, 512, 1
    x_big = jax.random.normal(jax.random.PRNGKey(0), (B, L), dtype=jnp.float32)
    out_big = jax.block_until_ready(_pad_pallas_2d(x_big, ML, float(PV)))
    ref_big = jnp.pad(x_big, ((0, 0), (0, ML - L)), constant_values=float(PV))
    assert out_big is not None
    assert out_big.shape == (B, ML), out_big.shape
    assert out_big.dtype == x_big.dtype
    assert bool(jnp.allclose(out_big, ref_big)), "aligned pallas-path mismatch"

    # 4) Unaligned in_len (320 % 128 != 0): fill-then-overwrite path.
    Lu = 320
    x_un = jax.random.normal(jax.random.PRNGKey(0), (B, Lu), dtype=jnp.float32)
    out_un = jax.block_until_ready(_pad_pallas_2d(x_un, ML, float(PV)))
    ref_un = jnp.pad(x_un, ((0, 0), (0, ML - Lu)), constant_values=float(PV))
    assert out_un is not None
    assert bool(jnp.allclose(out_un, ref_un)), "unaligned pallas-path mismatch"

    # 5) Leading dims + bf16 through the public wrapper (kernel path, flattened).
    x3 = jax.random.normal(jax.random.PRNGKey(0), (4, 512, L), dtype=jnp.bfloat16)
    out3 = jax.block_until_ready(pad_transform(x3, ML, PV))
    ref3 = jnp.pad(x3, ((0, 0), (0, 0), (0, ML - L)), constant_values=float(PV))
    assert out3.shape == (4, 512, ML), out3.shape
    assert out3.dtype == x3.dtype
    assert bool(jnp.array_equal(out3, ref3)), "bf16 3-D mismatch"

    print("KERNEL_OK")
</pallas_src>

<mosaic_0001>
module attributes {stable_mosaic.version = 11 : i64} {
  func.func @_pad_kernel(%arg0: i32, %arg1: memref<256x384xf32, #tpu.memory_space<vmem>>, %arg2: memref<256x512xf32, #tpu.memory_space<vmem>>) attributes {dimension_semantics = [#tpu.dimension_semantics<parallel>], iteration_bounds = array<i64: 8>, scalar_prefetch = 0 : i64, scratch_operands = 0 : i64, tpu.core_type = #tpu.core_type<tc>, window_params = [{transform_indices = @transform_0, window_bounds = array<i64: 256, 384>}, {transform_indices = @transform_1, window_bounds = array<i64: 256, 512>}]} {
    %c0 = arith.constant 0 : index
    %c0_0 = arith.constant 0 : index
    %0 = vector.load %arg1[%c0, %c0_0] : memref<256x384xf32, #tpu.memory_space<vmem>>, vector<256x384xf32>
    %c0_1 = arith.constant 0 : index
    %c0_2 = arith.constant 0 : index
    %1 = vector.load %arg2[%c0_1, %c0_2] : memref<256x512xf32, #tpu.memory_space<vmem>>, vector<256x384xf32>
    tpu.vector_store %arg2[%c0_1, %c0_2], %0 {strides = array<i32>} : memref<256x512xf32, #tpu.memory_space<vmem>>, vector<256x384xf32>,
    %cst = arith.constant 1.000000e+00 : f32
    %2 = vector.broadcast %cst : f32 to vector<256x128xf32>
    %c0_3 = arith.constant 0 : index
    %c384 = arith.constant 384 : index
    %3 = vector.load %arg2[%c0_3, %c384] : memref<256x512xf32, #tpu.memory_space<vmem>>, vector<256x128xf32>
    tpu.vector_store %arg2[%c0_3, %c384], %2 {strides = array<i32>} : memref<256x512xf32, #tpu.memory_space<vmem>>, vector<256x128xf32>,
    return
  }
  func.func @transform_0(%arg0: i32) -> (i32, i32) {
    %c0_i32 = arith.constant 0 : i32
    %c0_i32_0 = arith.constant 0 : i32
    return %arg0, %c0_i32 : i32, i32
  }
  func.func @transform_1(%arg0: i32) -> (i32, i32) {
    %c0_i32 = arith.constant 0 : i32
    %c0_i32_0 = arith.constant 0 : i32
    return %arg0, %c0_i32 : i32, i32
  }
}

</mosaic_0001>

<llo_original>
// kernel: tpu_custom_call.1
$region0: #{tpu_custom_call.1}
  #allocation0 [shape = 'u32[]', space=smem, size = 0x4, offset = 0x4, fixed_abs, tag = 'smem constant byte address 0x4 - core index']
  #allocation1 [shape = 'u32[144,128]{1,0:T(1,128)}', space=vmem, size = 0x12000, scoped, tag = 'internal scratch']
  %s0 = inlined_call_operand.hbm [shape: f32[2048,384], index: 0, kind: input, shape index: {}]
  %s1 = inlined_call_operand.hbm [shape: f32[2048,512], index: 1, kind: output, shape index: {}]
  %s2 = sld [smem:[#allocation0]]
  $region41: #{tpu_custom_call.1} parent=0
    _
  %s4 = ssub.s32 1, %s2
  %s5 = scalar_select 0, %s4, %s2
  $region1: #{tpu_custom_call.1} parent=0
    #allocation2 [shape = 'u8[786432]{0}', space=vmem, size = 0xc0000, scoped, tag = 'input window, operand 0']
    #allocation3 [shape = 's32[2]{0}', space=sflag, size = 0x8, scoped, tag = 'scoped memory for tpu_custom_call.1']
    #allocation4 [shape = 's32[2]{0}', space=sflag, size = 0x8, scoped, tag = 'scoped memory for tpu_custom_call.1']
    #allocation5 [shape = 'u8[1048576]{0}', space=vmem, size = 0x100000, scoped, tag = 'output window, operand 0']
    %6 = vsyncpa [#allocation3], 0
    %s7 = scalar_lea.sflag [#allocation3], 1
    %8 = vsyncpa %s7, 0
    %9 = vsyncpa [#allocation4], 0
    %s10 = scalar_lea.sflag [#allocation4], 1
    %11 = vsyncpa %s10, 0
    loop: start=0, step=1, limit=10
    $region2: #{tpu_custom_call.1} parent=1 // loop_pre_header
      _
    $region3: #{tpu_custom_call.1} parent=1 // loop_header
      %s13 = sphi 0, %s17
      %p14 = scmp.ge.s32.totalorder %s13, 10
      %s23 = sphi 0, %s25
      %s26 = sphi 0, %s23
      %s27 = sphi 0, %s26
      %s43 = sphi 0, %s27
      %s49 = sphi 0, %s51
      %s52 = sphi 0, %s49
      %s53 = sphi 0, %s52
      %s69 = sphi 0, %s53
    $region4: #{tpu_custom_call.1} parent=1 // loop_header_branch
      %16 = sbr.rel (%p14) target = $region8
    $region5: #{tpu_custom_call.1} parent=1 // loop_body
      %s18 = ssub.s32 %s13, 1
      %s19 = ssub.s32 %s13, 2
      %s20 = sadd.s32 %s13, 1
      %s21 = ssub.s32 %s13, %s20
      %p22 = scmp.eq.s32.totalorder %s21, 0
      %s24 = sadd.s32 %s23, 1
      %s25 = scalar_select %p22, %s23, %s24
      %p28 = pneg %p22
      %p29 = scmp.eq.s32.totalorder %s13, 7
      %p30 = por %p28, %p29
      %p31 = scmp.ne.s32.totalorder %s23, %s26
      %p32 = scmp.eq.s32.totalorder %s13, 0
      %p33 = por %p31, %p32
      %p34 = scmp.ne.s32.totalorder %s23, %s26
      %p35 = scmp.eq.s32.totalorder %s18, 7
      %p36 = por %p34, %p35
      %p37 = scmp.ne.s32.totalorder %s26, %s27
      %p38 = scmp.eq.s32.totalorder %s18, 0
      %p39 = por %p37, %p38
      %p40 = scmp.ne.s32.totalorder %s26, %s27
      %p41 = scmp.eq.s32.totalorder %s19, 7
      %p42 = por %p40, %p41
      %p44 = scmp.ne.s32.totalorder %s27, %s43
      %p45 = scmp.eq.s32.totalorder %s19, 0
      %p46 = por %p44, %p45
      %s47 = ssub.s32 %s13, %s20
      %p48 = scmp.eq.s32.totalorder %s47, 0
      %s50 = sadd.s32 %s49, 1
      %s51 = scalar_select %p48, %s49, %s50
      %p54 = pneg %p48
      %p55 = scmp.eq.s32.totalorder %s13, 7
      %p56 = por %p54, %p55
      %p57 = scmp.ne.s32.totalorder %s49, %s52
      %p58 = scmp.eq.s32.totalorder %s13, 0
      %p59 = por %p57, %p58
      %p60 = scmp.ne.s32.totalorder %s49, %s52
      %p61 = scmp.eq.s32.totalorder %s18, 7
      %p62 = por %p60, %p61
      %p63 = scmp.ne.s32.totalorder %s52, %s53
      %p64 = scmp.eq.s32.totalorder %s18, 0
      %p65 = por %p63, %p64
      %p66 = scmp.ne.s32.totalorder %s52, %s53
      %p67 = scmp.eq.s32.totalorder %s19, 7
      %p68 = por %p66, %p67
      %p70 = scmp.ne.s32.totalorder %s53, %s69
      %p71 = scmp.eq.s32.totalorder %s19, 0
      %p72 = por %p70, %p71
      %p73 = scmp.le.s32.totalorder 1, %s13
      %p74 = scmp.lt.s32.totalorder %s13, 9
      %p75 = pnand %p73, %p74
      %p76 = pneg %p75
      // Predicated region
      $region9: #{tpu_custom_call.1} parent=5 // pred_check
        _
      $region10: #{tpu_custom_call.1} parent=5 // pred_check_branch
        %78 = sbr.rel (%p75) target = $region12
      $region11: #{tpu_custom_call.1} parent=5 // pred_region
        %s79 = ssub.s32 %s13, 1
      $region12: #{tpu_custom_call.1} parent=5 // pred_fallthru
        _
      %p80 = scmp.lt.s32.totalorder %s13, 8
      // Predicated region
      $region13: #{tpu_custom_call.1} parent=5 // pred_check
        %p81 = pneg %p80
      $region14: #{tpu_custom_call.1} parent=5 // pred_check_branch
        %83 = sbr.rel (%p81) target = $region16
      $region15: #{tpu_custom_call.1} parent=5 // pred_region
        // Predicated region
        $region17: #{tpu_custom_call.1} parent=15 // pred_check
          %p84 = pneg %p33
        $region18: #{tpu_custom_call.1} parent=15 // pred_check_branch
          %86 = sbr.rel (%p84) target = $region20
        $region19: #{tpu_custom_call.1} parent=15 // pred_region
          %s87 = sand.u32 %s23, 1
          %s88 = scalar_lea.sflag [#allocation3], %s87
          %s89 = sand.u32 %s23, 1
          %s90 = smul.addr %s89, 768
          %s91 = scalar_lea.vmem [#allocation2], %s90
          %s92 = smul.u32 32, %s13
          %s94 = ssub.s32 12288, 12288
          %95 = vsyncadd %s88, %s94
          %s96 = smul.addr %s92, 3
          %s97 = smul.addr %s96, 128
          %s98 = scalar_lea.hbm %s0, %s97
          %s99 = sshll.u32 %s91, 4
          %s100 = int_to_ptr.vmem [resolvable:$true] %s99
          %105 = dma.hbm_to_vmem [thread:$0]  %s98, 12288, %s100, %s88, 384, 384, 24
        $region20: #{tpu_custom_call.1} parent=15 // pred_fallthru
          _
      $region16: #{tpu_custom_call.1} parent=5 // pred_fallthru
        _
      %p106 = scmp.le.s32.totalorder 1, %s13
      %p107 = scmp.lt.s32.totalorder %s13, 9
      %p108 = pnand %p106, %p107
      %p109 = pneg %p108
      // Predicated region
      $region21: #{tpu_custom_call.1} parent=5 // pred_check
        _
      $region22: #{tpu_custom_call.1} parent=5 // pred_check_branch
        %111 = sbr.rel (%p108) target = $region24
      $region23: #{tpu_custom_call.1} parent=5 // pred_region
        %s112 = ssub.s32 %s13, 1
        %s113 = sand.u32 %s26, 1
        %s114 = scalar_lea.sflag [#allocation3], %s113
        %s115 = sand.u32 %s26, 1
        %s116 = smul.addr %s115, 768
        %s117 = scalar_lea.vmem [#allocation2], %s116
        // Predicated region
        $region25: #{tpu_custom_call.1} parent=23 // pred_check
          %p118 = pneg %p39
        $region26: #{tpu_custom_call.1} parent=23 // pred_check_branch
          %120 = sbr.rel (%p118) target = $region28
        $region27: #{tpu_custom_call.1} parent=23 // pred_region
          %121 = dma.done %s114, 12288
        $region28: #{tpu_custom_call.1} parent=23 // pred_fallthru
          _
        %s122 = sand.u32 %s26, 1
        %s123 = scalar_lea.sflag [#allocation3], %s122
        %s124 = sand.u32 %s26, 1
        %s125 = smul.addr %s124, 768
        %s126 = scalar_lea.vmem [#allocation2], %s125
        %p127 = pneg %p39
        %p128 = pneg %p36
        %p129 = pneg %p65
        %p130 = pneg %p62
        %s131 = sand.u32 %s52, 1
        %s132 = scalar_lea.sflag [#allocation4], %s131
        %s133 = sand.u32 %s52, 1
        %s134 = smul.addr %s133, 1024
        %s135 = scalar_lea.vmem [#allocation5], %s134
        %s136 = smul.u32 32, %s18
        %s137 = smul.u32 32, %s18
        %v138 = vld [vmem:[%s117] sm:$0xff]
        %v139 = vld [vmem:[%s117 + $0x8] sm:$0xff]
        %v140 = vld [vmem:[%s117 + $0x10] sm:$0xff]
        %v141 = vld [vmem:[%s117 + $0x18] sm:$0xff]
        %v142 = vld [vmem:[%s117 + $0x20] sm:$0xff]
        %v143 = vld [vmem:[%s117 + $0x28] sm:$0xff]
        %v144 = vld [vmem:[%s117 + $0x30] sm:$0xff]
        %v145 = vld [vmem:[%s117 + $0x38] sm:$0xff]
        %v146 = vld [vmem:[%s117 + $0x40] sm:$0xff]
        %v147 = vld [vmem:[%s117 + $0x48] sm:$0xff]
        %v148 = vld [vmem:[%s117 + $0x50] sm:$0xff]
        %v149 = vld [vmem:[%s117 + $0x58] sm:$0xff]
        %v150 = vld [vmem:[%s117 + $0x60] sm:$0xff]
        %v151 = vld [vmem:[%s117 + $0x68] sm:$0xff]
        %v152 = vld [vmem:[%s117 + $0x70] sm:$0xff]
        %v153 = vld [vmem:[%s117 + $0x78] sm:$0xff]
        %v154 = vld [vmem:[%s117 + $0x80] sm:$0xff]
        %v155 = vld [vmem:[%s117 + $0x88] sm:$0xff]
        %v156 = vld [vmem:[%s117 + $0x90] sm:$0xff]
        %v157 = vld [vmem:[%s117 + $0x98] sm:$0xff]
        %v158 = vld [vmem:[%s117 + $0xa0] sm:$0xff]
        %v159 = vld [vmem:[%s117 + $0xa8] sm:$0xff]
        %v160 = vld [vmem:[%s117 + $0xb0] sm:$0xff]
        %v161 = vld [vmem:[%s117 + $0xb8] sm:$0xff]
        %v162 = vld [vmem:[%s117 + $0xc0] sm:$0xff]
        %v163 = vld [vmem:[%s117 + $0xc8] sm:$0xff]
        %v164 = vld [vmem:[%s117 + $0xd0] sm:$0xff]
        %v165 = vld [vmem:[%s117 + $0xd8] sm:$0xff]
        %v166 = vld [vmem:[%s117 + $0xe0] sm:$0xff]
        %v167 = vld [vmem:[%s117 + $0xe8] sm:$0xff]
        %v168 = vld [vmem:[%s117 + $0xf0] sm:$0xff]
        %v169 = vld [vmem:[%s117 + $0xf8] sm:$0xff]
        %v170 = vld [vmem:[%s117 + $0x100] sm:$0xff]
        %v171 = vld [vmem:[%s117 + $0x108] sm:$0xff]
        %v172 = vld [vmem:[%s117 + $0x110] sm:$0xff]
        %v173 = vld [vmem:[%s117 + $0x118] sm:$0xff]
        %v174 = vld [vmem:[%s117 + $0x120] sm:$0xff]
        %v175 = vld [vmem:[%s117 + $0x128] sm:$0xff]
        %v176 = vld [vmem:[%s117 + $0x130] sm:$0xff]
        %v177 = vld [vmem:[%s117 + $0x138] sm:$0xff]
        %v178 = vld [vmem:[%s117 + $0x140] sm:$0xff]
        %v179 = vld [vmem:[%s117 + $0x148] sm:$0xff]
        %v180 = vld [vmem:[%s117 + $0x150] sm:$0xff]
        %v181 = vld [vmem:[%s117 + $0x158] sm:$0xff]
        %v182 = vld [vmem:[%s117 + $0x160] sm:$0xff]
        %v183 = vld [vmem:[%s117 + $0x168] sm:$0xff]
        %v184 = vld [vmem:[%s117 + $0x170] sm:$0xff]
        %v185 = vld [vmem:[%s117 + $0x178] sm:$0xff]
        %v186 = vld [vmem:[%s117 + $0x180] sm:$0xff]
        %v187 = vld [vmem:[%s117 + $0x188] sm:$0xff]
        %v188 = vld [vmem:[%s117 + $0x190] sm:$0xff]
        %v189 = vld [vmem:[%s117 + $0x198] sm:$0xff]
        %v190 = vld [vmem:[%s117 + $0x1a0] sm:$0xff]
        %v191 = vld [vmem:[%s117 + $0x1a8] sm:$0xff]
        %v192 = vld [vmem:[%s117 + $0x1b0] sm:$0xff]
        %v193 = vld [vmem:[%s117 + $0x1b8] sm:$0xff]
        %v194 = vld [vmem:[%s117 + $0x1c0] sm:$0xff]
        %v195 = vld [vmem:[%s117 + $0x1c8] sm:$0xff]
        %v196 = vld [vmem:[%s117 + $0x1d0] sm:$0xff]
        %v197 = vld [vmem:[%s117 + $0x1d8] sm:$0xff]
        %v198 = vld [vmem:[%s117 + $0x1e0] sm:$0xff]
        %v199 = vld [vmem:[%s117 + $0x1e8] sm:$0xff]
        %v200 = vld [vmem:[%s117 + $0x1f0] sm:$0xff]
        %v201 = vld [vmem:[%s117 + $0x1f8] sm:$0xff]
        %v202 = vld [vmem:[%s117 + $0x200] sm:$0xff]
        %v203 = vld [vmem:[%s117 + $0x208] sm:$0xff]
        %v204 = vld [vmem:[%s117 + $0x210] sm:$0xff]
        %v205 = vld [vmem:[%s117 + $0x218] sm:$0xff]
        %v206 = vld [vmem:[%s117 + $0x220] sm:$0xff]
        %v207 = vld [vmem:[%s117 + $0x228] sm:$0xff]
        %v208 = vld [vmem:[%s117 + $0x230] sm:$0xff]
        %v209 = vld [vmem:[%s117 + $0x238] sm:$0xff]
        %v210 = vld [vmem:[%s117 + $0x240] sm:$0xff]
        %v211 = vld [vmem:[%s117 + $0x248] sm:$0xff]
        %v212 = vld [vmem:[%s117 + $0x250] sm:$0xff]
        %v213 = vld [vmem:[%s117 + $0x258] sm:$0xff]
        %v214 = vld [vmem:[%s117 + $0x260] sm:$0xff]
        %v215 = vld [vmem:[%s117 + $0x268] sm:$0xff]
        %v216 = vld [vmem:[%s117 + $0x270] sm:$0xff]
        %v217 = vld [vmem:[%s117 + $0x278] sm:$0xff]
        %v218 = vld [vmem:[%s117 + $0x280] sm:$0xff]
        %v219 = vld [vmem:[%s117 + $0x288] sm:$0xff]
        %v220 = vld [vmem:[%s117 + $0x290] sm:$0xff]
        %v221 = vld [vmem:[%s117 + $0x298] sm:$0xff]
        %v222 = vld [vmem:[%s117 + $0x2a0] sm:$0xff]
        %v223 = vld [vmem:[%s117 + $0x2a8] sm:$0xff]
        %v224 = vld [vmem:[%s117 + $0x2b0] sm:$0xff]
        %v225 = vld [vmem:[%s117 + $0x2b8] sm:$0xff]
        %v226 = vld [vmem:[%s117 + $0x2c0] sm:$0xff]
        %v227 = vld [vmem:[%s117 + $0x2c8] sm:$0xff]
        %v228 = vld [vmem:[%s117 + $0x2d0] sm:$0xff]
        %v229 = vld [vmem:[%s117 + $0x2d8] sm:$0xff]
        %v230 = vld [vmem:[%s117 + $0x2e0] sm:$0xff]
        %v231 = vld [vmem:[%s117 + $0x2e8] sm:$0xff]
        %v232 = vld [vmem:[%s117 + $0x2f0] sm:$0xff]
        %v233 = vld [vmem:[%s117 + $0x2f8] sm:$0xff]
        %234 = vst [vmem:[%s135] sm:$0xff] %v138
        %235 = vst [vmem:[%s135 + $0x8] sm:$0xff] %v139
        %236 = vst [vmem:[%s135 + $0x10] sm:$0xff] %v140
        %237 = vst [vmem:[%s135 + $0x20] sm:$0xff] %v141
        %238 = vst [vmem:[%s135 + $0x28] sm:$0xff] %v142
        %239 = vst [vmem:[%s135 + $0x30] sm:$0xff] %v143
        %240 = vst [vmem:[%s135 + $0x40] sm:$0xff] %v144
        %241 = vst [vmem:[%s135 + $0x48] sm:$0xff] %v145
        %242 = vst [vmem:[%s135 + $0x50] sm:$0xff] %v146
        %243 = vst [vmem:[%s135 + $0x60] sm:$0xff] %v147
        %244 = vst [vmem:[%s135 + $0x68] sm:$0xff] %v148
        %245 = vst [vmem:[%s135 + $0x70] sm:$0xff] %v149
        %246 = vst [vmem:[%s135 + $0x80] sm:$0xff] %v150
        %247 = vst [vmem:[%s135 + $0x88] sm:$0xff] %v151
        %248 = vst [vmem:[%s135 + $0x90] sm:$0xff] %v152
        %249 = vst [vmem:[%s135 + $0xa0] sm:$0xff] %v153
        %250 = vst [vmem:[%s135 + $0xa8] sm:$0xff] %v154
        %251 = vst [vmem:[%s135 + $0xb0] sm:$0xff] %v155
        %252 = vst [vmem:[%s135 + $0xc0] sm:$0xff] %v156
        %253 = vst [vmem:[%s135 + $0xc8] sm:$0xff] %v157
        %254 = vst [vmem:[%s135 + $0xd0] sm:$0xff] %v158
        %255 = vst [vmem:[%s135 + $0xe0] sm:$0xff] %v159
        %256 = vst [vmem:[%s135 + $0xe8] sm:$0xff] %v160
        %257 = vst [vmem:[%s135 + $0xf0] sm:$0xff] %v161
        %258 = vst [vmem:[%s135 + $0x100] sm:$0xff] %v162
        %259 = vst [vmem:[%s135 + $0x108] sm:$0xff] %v163
        %260 = vst [vmem:[%s135 + $0x110] sm:$0xff] %v164
        %261 = vst [vmem:[%s135 + $0x120] sm:$0xff] %v165
        %262 = vst [vmem:[%s135 + $0x128] sm:$0xff] %v166
        %263 = vst [vmem:[%s135 + $0x130] sm:$0xff] %v167
        %264 = vst [vmem:[%s135 + $0x140] sm:$0xff] %v168
        %265 = vst [vmem:[%s135 + $0x148] sm:$0xff] %v169
        %266 = vst [vmem:[%s135 + $0x150] sm:$0xff] %v170
        %267 = vst [vmem:[%s135 + $0x160] sm:$0xff] %v171
        %268 = vst [vmem:[%s135 + $0x168] sm:$0xff] %v172
        %269 = vst [vmem:[%s135 + $0x170] sm:$0xff] %v173
        %270 = vst [vmem:[%s135 + $0x180] sm:$0xff] %v174
        %271 = vst [vmem:[%s135 + $0x188] sm:$0xff] %v175
        %272 = vst [vmem:[%s135 + $0x190] sm:$0xff] %v176
        %273 = vst [vmem:[%s135 + $0x1a0] sm:$0xff] %v177
        %274 = vst [vmem:[%s135 + $0x1a8] sm:$0xff] %v178
        %275 = vst [vmem:[%s135 + $0x1b0] sm:$0xff] %v179
        %276 = vst [vmem:[%s135 + $0x1c0] sm:$0xff] %v180
        %277 = vst [vmem:[%s135 + $0x1c8] sm:$0xff] %v181
        %278 = vst [vmem:[%s135 + $0x1d0] sm:$0xff] %v182
        %279 = vst [vmem:[%s135 + $0x1e0] sm:$0xff] %v183
        %280 = vst [vmem:[%s135 + $0x1e8] sm:$0xff] %v184
        %281 = vst [vmem:[%s135 + $0x1f0] sm:$0xff] %v185
        %282 = vst [vmem:[%s135 + $0x200] sm:$0xff] %v186
        %283 = vst [vmem:[%s135 + $0x208] sm:$0xff] %v187
        %284 = vst [vmem:[%s135 + $0x210] sm:$0xff] %v188
        %285 = vst [vmem:[%s135 + $0x220] sm:$0xff] %v189
        %286 = vst [vmem:[%s135 + $0x228] sm:$0xff] %v190
        %287 = vst [vmem:[%s135 + $0x230] sm:$0xff] %v191
        %288 = vst [vmem:[%s135 + $0x240] sm:$0xff] %v192
        %289 = vst [vmem:[%s135 + $0x248] sm:$0xff] %v193
        %290 = vst [vmem:[%s135 + $0x250] sm:$0xff] %v194
        %291 = vst [vmem:[%s135 + $0x260] sm:$0xff] %v195
        %292 = vst [vmem:[%s135 + $0x268] sm:$0xff] %v196
        %293 = vst [vmem:[%s135 + $0x270] sm:$0xff] %v197
        %294 = vst [vmem:[%s135 + $0x280] sm:$0xff] %v198
        %295 = vst [vmem:[%s135 + $0x288] sm:$0xff] %v199
        %296 = vst [vmem:[%s135 + $0x290] sm:$0xff] %v200
        %297 = vst [vmem:[%s135 + $0x2a0] sm:$0xff] %v201
        %298 = vst [vmem:[%s135 + $0x2a8] sm:$0xff] %v202
        %299 = vst [vmem:[%s135 + $0x2b0] sm:$0xff] %v203
        %300 = vst [vmem:[%s135 + $0x2c0] sm:$0xff] %v204
        %301 = vst [vmem:[%s135 + $0x2c8] sm:$0xff] %v205
        %302 = vst [vmem:[%s135 + $0x2d0] sm:$0xff] %v206
        %303 = vst [vmem:[%s135 + $0x2e0] sm:$0xff] %v207
        %304 = vst [vmem:[%s135 + $0x2e8] sm:$0xff] %v208
        %305 = vst [vmem:[%s135 + $0x2f0] sm:$0xff] %v209
        %306 = vst [vmem:[%s135 + $0x300] sm:$0xff] %v210
        %307 = vst [vmem:[%s135 + $0x308] sm:$0xff] %v211
        %308 = vst [vmem:[%s135 + $0x310] sm:$0xff] %v212
        %309 = vst [vmem:[%s135 + $0x320] sm:$0xff] %v213
        %310 = vst [vmem:[%s135 + $0x328] sm:$0xff] %v214
        %311 = vst [vmem:[%s135 + $0x330] sm:$0xff] %v215
        %312 = vst [vmem:[%s135 + $0x340] sm:$0xff] %v216
        %313 = vst [vmem:[%s135 + $0x348] sm:$0xff] %v217
        %314 = vst [vmem:[%s135 + $0x350] sm:$0xff] %v218
        %315 = vst [vmem:[%s135 + $0x360] sm:$0xff] %v219
        %316 = vst [vmem:[%s135 + $0x368] sm:$0xff] %v220
        %317 = vst [vmem:[%s135 + $0x370] sm:$0xff] %v221
        %318 = vst [vmem:[%s135 + $0x380] sm:$0xff] %v222
        %319 = vst [vmem:[%s135 + $0x388] sm:$0xff] %v223
        %320 = vst [vmem:[%s135 + $0x390] sm:$0xff] %v224
        %321 = vst [vmem:[%s135 + $0x3a0] sm:$0xff] %v225
        %322 = vst [vmem:[%s135 + $0x3a8] sm:$0xff] %v226
        %323 = vst [vmem:[%s135 + $0x3b0] sm:$0xff] %v227
        %324 = vst [vmem:[%s135 + $0x3c0] sm:$0xff] %v228
        %325 = vst [vmem:[%s135 + $0x3c8] sm:$0xff] %v229
        %326 = vst [vmem:[%s135 + $0x3d0] sm:$0xff] %v230
        %327 = vst [vmem:[%s135 + $0x3e0] sm:$0xff] %v231
        %328 = vst [vmem:[%s135 + $0x3e8] sm:$0xff] %v232
        %329 = vst [vmem:[%s135 + $0x3f0] sm:$0xff] %v233
        %330 = vst [vmem:[%s135 + $0x18] sm:$0xff] 1.0
        %331 = vst [vmem:[%s135 + $0x38] sm:$0xff] 1.0
        %332 = vst [vmem:[%s135 + $0x58] sm:$0xff] 1.0
        %333 = vst [vmem:[%s135 + $0x78] sm:$0xff] 1.0
        %334 = vst [vmem:[%s135 + $0x98] sm:$0xff] 1.0
        %335 = vst [vmem:[%s135 + $0xb8] sm:$0xff] 1.0
        %336 = vst [vmem:[%s135 + $0xd8] sm:$0xff] 1.0
        %337 = vst [vmem:[%s135 + $0xf8] sm:$0xff] 1.0
        %338 = vst [vmem:[%s135 + $0x118] sm:$0xff] 1.0
        %339 = vst [vmem:[%s135 + $0x138] sm:$0xff] 1.0
        %340 = vst [vmem:[%s135 + $0x158] sm:$0xff] 1.0
        %341 = vst [vmem:[%s135 + $0x178] sm:$0xff] 1.0
        %342 = vst [vmem:[%s135 + $0x198] sm:$0xff] 1.0
        %343 = vst [vmem:[%s135 + $0x1b8] sm:$0xff] 1.0
        %344 = vst [vmem:[%s135 + $0x1d8] sm:$0xff] 1.0
        %345 = vst [vmem:[%s135 + $0x1f8] sm:$0xff] 1.0
        %346 = vst [vmem:[%s135 + $0x218] sm:$0xff] 1.0
        %347 = vst [vmem:[%s135 + $0x238] sm:$0xff] 1.0
        %348 = vst [vmem:[%s135 + $0x258] sm:$0xff] 1.0
        %349 = vst [vmem:[%s135 + $0x278] sm:$0xff] 1.0
        %350 = vst [vmem:[%s135 + $0x298] sm:$0xff] 1.0
        %351 = vst [vmem:[%s135 + $0x2b8] sm:$0xff] 1.0
        %352 = vst [vmem:[%s135 + $0x2d8] sm:$0xff] 1.0
        %353 = vst [vmem:[%s135 + $0x2f8] sm:$0xff] 1.0
        %354 = vst [vmem:[%s135 + $0x318] sm:$0xff] 1.0
        %355 = vst [vmem:[%s135 + $0x338] sm:$0xff] 1.0
        %356 = vst [vmem:[%s135 + $0x358] sm:$0xff] 1.0
        %357 = vst [vmem:[%s135 + $0x378] sm:$0xff] 1.0
        %358 = vst [vmem:[%s135 + $0x398] sm:$0xff] 1.0
        %359 = vst [vmem:[%s135 + $0x3b8] sm:$0xff] 1.0
        %360 = vst [vmem:[%s135 + $0x3d8] sm:$0xff] 1.0
        %361 = vst [vmem:[%s135 + $0x3f8] sm:$0xff] 1.0
        %s362 = sand.u32 %s52, 1
        %s363 = scalar_lea.sflag [#allocation4], %s362
        %s364 = sand.u32 %s52, 1
        %s365 = smul.addr %s364, 1024
        %s366 = scalar_lea.vmem [#allocation5], %s365
        // Predicated region
        $region29: #{tpu_custom_call.1} parent=23 // pred_check
          %p367 = pneg %p62
        $region30: #{tpu_custom_call.1} parent=23 // pred_check_branch
          %369 = sbr.rel (%p367) target = $region32
        $region31: #{tpu_custom_call.1} parent=23 // pred_region
          %s370 = smul.u32 32, %s18
          %s372 = ssub.s32 16384, 16384
          %373 = vsyncadd %s363, %s372
          %s374 = smul.addr %s370, 4
          %s375 = smul.addr %s374, 128
          %s376 = scalar_lea.hbm %s1, %s375
          %s377 = sshll.u32 %s366, 4
          %s378 = int_to_ptr.vmem [resolvable:$true] %s377
          %383 = dma.vmem_to_hbm [thread:$0]  %s378, 16384, %s376, %s363, 512, 512, 32
        $region32: #{tpu_custom_call.1} parent=23 // pred_fallthru
          _
      $region24: #{tpu_custom_call.1} parent=5 // pred_fallthru
        _
      %p384 = scmp.le.s32.totalorder 2, %s13
      // Predicated region
      $region33: #{tpu_custom_call.1} parent=5 // pred_check
        %p385 = pneg %p384
      $region34: #{tpu_custom_call.1} parent=5 // pred_check_branch
        %387 = sbr.rel (%p385) target = $region36
      $region35: #{tpu_custom_call.1} parent=5 // pred_region
        %s388 = ssub.s32 %s13, 2
        // Predicated region
        $region37: #{tpu_custom_call.1} parent=35 // pred_check
          %p389 = pneg %p68
        $region38: #{tpu_custom_call.1} parent=35 // pred_check_branch
          %391 = sbr.rel (%p389) target = $region40
        $region39: #{tpu_custom_call.1} parent=35 // pred_region
          %s392 = sand.u32 %s53, 1
          %s393 = scalar_lea.sflag [#allocation4], %s392
          %s394 = sand.u32 %s53, 1
          %s395 = smul.addr %s394, 1024
          %s396 = scalar_lea.vmem [#allocation5], %s395
          %397 = dma.done %s393, 16384
        $region40: #{tpu_custom_call.1} parent=35 // pred_fallthru
          _
      $region36: #{tpu_custom_call.1} parent=5 // pred_fallthru
        _
    $region6: #{tpu_custom_call.1} parent=1 // loop_footer
      %s17 = sadd.s32 1, %s13
    $region7: #{tpu_custom_call.1} parent=1 // loop_footer_branch
      %12 = sbr.rel target = $region3
    $region8: #{tpu_custom_call.1} parent=1 // loop_exit
      _
    %398 = vsyncpa [#allocation3], 1
    %s399 = scalar_lea.sflag [#allocation3], 1
    %400 = vsyncpa %s399, 1
    %401 = vsyncpa [#allocation4], 1
    %s402 = scalar_lea.sflag [#allocation4], 1
    %403 = vsyncpa %s402, 1

</llo_original>
